<compile_context>
chip_gen: v7x
topology: tpu7x:2x2x1
jax: 0.10.0
libtpu: 0.0.40
codegen_flags: <defaults>
</compile_context>

<pallas_src>
import math

import jax
import jax.numpy as jnp
from jax.experimental import pallas as pl
from jax.experimental.pallas import tpu as pltpu


def _vroll_kernel(shift_ref, x_ref, o_ref):
    # shift_ref : SMEM scalar-prefetch, shape (1,) int32, already reduced mod H.
    # x_ref/o_ref : VMEM blocks whose second-to-last axis is the FULL H.
    # The roll is one XLU sublane rotation (dynamic amount); no scratch, no
    # extra VMEM passes.  pltpu.roll matches jnp.roll semantics:
    #   out[i] = x[(i - shift) mod H].
    # Note: H should be a multiple of 8 (native sublane count) for the cheapest
    # codegen; the demo uses H = 16.
    h_axis = len(x_ref.shape) - 2
    o_ref[...] = pltpu.roll(x_ref[...], shift_ref[0], h_axis)


def vertical_roll_pallas(img, steps, *, target_block_bytes=2 << 20):
    """Roll `img` (B, C, H, W) by `steps` rows along H (axis -2), with wrap."""
    B, C, H, W = img.shape
    BC = B * C
    itemsize = jnp.dtype(img.dtype).itemsize

    # Normalize the shift into [0, H) on the host side; the kernel sees a
    # non-negative scalar in SMEM.
    s_mod = (jnp.asarray(steps, jnp.int32).reshape(()) % jnp.int32(H)).reshape((1,))

    lane_dense = (W < 128) and ((BC * W) % 128 == 0)
    if lane_dense:
        # W < 128 would waste most of each vreg's 128 lanes and force masked
        # partial stores.  The roll along H is independent per (b, c, w), so
        # fold (B, C, W) into the lane dimension: (H, B*C*W) is lane-dense.
        x = jnp.transpose(img, (2, 0, 1, 3)).reshape(H, BC * W)
        L = BC * W
        per_128_bytes = H * 128 * itemsize
        tl_units = max(1, min(L // 128, target_block_bytes // per_128_bytes))
        TL = 128 * tl_units
        grid = (pl.cdiv(L, TL),)
        block = (H, TL)
        index_map = lambda j, s_ref: (0, j)
    else:
        # W is already lane-dense: keep the bytes in place, just view as
        # (B*C, H, W) and coarsen the grid over fused (B, C) slabs so each
        # step moves a multi-MiB block (fewer, bigger DMAs).
        x = img.reshape(BC, H, W)
        slab_bytes = H * W * itemsize
        TS = max(1, min(BC, target_block_bytes // slab_bytes))
        if pl.cdiv(BC, TS) < 2 and BC >= 2:
            TS = pl.cdiv(BC, 2)  # keep both v7x TensorCores busy
        grid = (pl.cdiv(BC, TS),)
        block = (TS, H, W)
        index_map = lambda i, s_ref: (i, 0, 0)

    # in + out blocks, double-buffered (default depth 2), plus headroom.
    # Explicit so large tiles don't trip chip-dependent scoped-VMEM defaults
    # (16 MiB on v5e) while staying far below v7x's 64 MiB physical VMEM.
    block_bytes = math.prod(block) * itemsize
    vmem_limit = max(16 << 20, 4 * block_bytes + (4 << 20))

    out = pl.pallas_call(
        _vroll_kernel,
        out_shape=jax.ShapeDtypeStruct(x.shape, x.dtype),
        grid_spec=pltpu.PrefetchScalarGridSpec(
            num_scalar_prefetch=1,
            grid=grid,
            in_specs=[pl.BlockSpec(block, index_map)],
            out_specs=pl.BlockSpec(block, index_map),
        ),
        compiler_params=pltpu.CompilerParams(
            dimension_semantics=("parallel",),
            vmem_limit_bytes=int(vmem_limit),
        ),
    )(s_mod, x)

    if lane_dense:
        return jnp.transpose(out.reshape(H, B, C, W), (1, 2, 0, 3))
    return out.reshape(B, C, H, W)


class RandomVerticalRoll:
    """JAX/Pallas port of trade.datasets.RandomVerticalRoll (forward only).

    The module has no parameters.  torch.randint(...).item() (host RNG) is
    mirrored with jax.random.randint in the wrapper; the data movement (the
    roll) runs inside the Pallas kernel.  Faithful quirk kept from the
    original: the shift range is derived from the *width* (img.shape[-1])
    even though the roll is along the height axis (dims=-2).
    """

    def __call__(self, img, key):
        N = img.shape[-1]                      # width, as in the PyTorch code
        low, high = -(N // 2), N // 2          # torch.randint: high exclusive
        steps = jax.random.randint(key, (1,), low, high, dtype=jnp.int32)
        return vertical_roll_pallas(img, steps), steps


if __name__ == "__main__":
    key = jax.random.PRNGKey(0)
    k_img, k_steps = jax.random.split(key)

    x = jax.random.normal(k_img, (2, 4, 16, 16), dtype=jnp.float32)

    mod = RandomVerticalRoll()
    out, steps = mod(x, k_steps)
    out = jax.block_until_ready(out)

    # Reference check against jnp.roll (== torch.roll semantics along dims=-2).
    ref = jnp.roll(x, int(steps[0]), axis=-2)
    assert out.shape == x.shape and out.dtype == x.dtype
    assert jnp.array_equal(out, ref), "Pallas roll mismatch vs jnp.roll reference"

    print("KERNEL_OK")
</pallas_src>

<mosaic_0001>
module attributes {stable_mosaic.version = 11 : i64} {
  func.func @_vroll_kernel(%arg0: i32, %arg1: memref<1xi32, #tpu.memory_space<smem>>, %arg2: memref<16x128xf32, #tpu.memory_space<vmem>>, %arg3: memref<16x128xf32, #tpu.memory_space<vmem>>) attributes {dimension_semantics = [#tpu.dimension_semantics<parallel>], iteration_bounds = array<i64: 1>, scalar_prefetch = 1 : i64, scratch_operands = 0 : i64, tpu.core_type = #tpu.core_type<tc>, window_params = [{transform_indices = @transform_0, window_bounds = array<i64: 16, 128>}, {transform_indices = @transform_1, window_bounds = array<i64: 16, 128>}]} {
    %c0 = arith.constant 0 : index
    %c0_0 = arith.constant 0 : index
    %0 = vector.load %arg2[%c0, %c0_0] : memref<16x128xf32, #tpu.memory_space<vmem>>, vector<16x128xf32>
    %c0_1 = arith.constant 0 : index
    %1 = memref.load %arg1[%c0_1] : memref<1xi32, #tpu.memory_space<smem>>
    %2 = tpu.dynamic_rotate %0 by %1 dim 0 : vector<16x128xf32>, i32 -> vector<16x128xf32>
    %c0_2 = arith.constant 0 : index
    %c0_3 = arith.constant 0 : index
    %3 = vector.load %arg3[%c0_2, %c0_3] : memref<16x128xf32, #tpu.memory_space<vmem>>, vector<16x128xf32>
    tpu.vector_store %arg3[%c0_2, %c0_3], %2 {strides = array<i32>} : memref<16x128xf32, #tpu.memory_space<vmem>>, vector<16x128xf32>,
    return
  }
  func.func @transform_0(%arg0: i32, %arg1: memref<1xi32, #tpu.memory_space<smem>>) -> (i32, i32) {
    %c0_i32 = arith.constant 0 : i32
    %c0_i32_0 = arith.constant 0 : i32
    return %c0_i32, %arg0 : i32, i32
  }
  func.func @transform_1(%arg0: i32, %arg1: memref<1xi32, #tpu.memory_space<smem>>) -> (i32, i32) {
    %c0_i32 = arith.constant 0 : i32
    %c0_i32_0 = arith.constant 0 : i32
    return %c0_i32, %arg0 : i32, i32
  }
}

</mosaic_0001>

<llo_original>
// kernel: tpu_custom_call.1
$region0: #{tpu_custom_call.1}
  #allocation0 [shape = 'u32[]', space=smem, size = 0x4, offset = 0x4, fixed_abs, tag = 'smem constant byte address 0x4 - core index']
  #allocation1 [shape = 'u32[144,128]{1,0:T(1,128)}', space=vmem, size = 0x12000, scoped, tag = 'internal scratch']
  #allocation2 [shape = 's32[1]{0}', space=sflag, size = 0x4, scoped, tag = 'scoped memory for tpu_custom_call.1']
  #allocation3 [shape = 's32[1]{0:T(128)S(6)}', space=smem, size = 0x200, scoped, tag = 'prefetched SMEM operand 0']
  %s0 = inlined_call_operand.<no memory space> [shape: s32[1], index: 0, kind: input, shape index: {}]
  %s1 = inlined_call_operand.hbm [shape: f32[16,128], index: 1, kind: input, shape index: {}]
  %s2 = inlined_call_operand.hbm [shape: f32[16,128], index: 2, kind: output, shape index: {}]
  %s3 = sld [smem:[#allocation0]]
  $region18: #{tpu_custom_call.1} parent=0
    _
  %s5 = ssub.s32 1, %s3
  %s6 = scalar_select 0, %s5, %s3
  %7 = sst [smem:[#allocation3]] %s0
  $region1: #{tpu_custom_call.1} parent=0
    #allocation4 [shape = 'u8[8192]{0}', space=vmem, size = 0x2000, scoped, tag = 'input window, operand 1, single buffered']
    #allocation5 [shape = 's32[1]{0}', space=sflag, size = 0x4, scoped, tag = 'scoped memory for tpu_custom_call.1']
    #allocation6 [shape = 's32[1]{0}', space=sflag, size = 0x4, scoped, tag = 'scoped memory for tpu_custom_call.1']
    #allocation7 [shape = 'u8[8192]{0}', space=vmem, size = 0x2000, scoped, tag = 'output window, operand 0, single buffered']
    %8 = vsyncpa [#allocation5], 0
    %9 = vsyncpa [#allocation6], 0
    // Predicated region
    $region2: #{tpu_custom_call.1} parent=1 // pred_check
      _
    $region3: #{tpu_custom_call.1} parent=1 // pred_check_branch
      %11 = sbr.rel (0) target = $region5
    $region4: #{tpu_custom_call.1} parent=1 // pred_region
      %s13 = ssub.s32 256, 256
      %14 = vsyncadd [#allocation5], %s13
      %s15 = sshll.u32 [#allocation4], 4
      %s16 = int_to_ptr.vmem [resolvable:$true] %s15
      %21 = dma.hbm_to_vmem [thread:$0]  %s1, 256, %s16, [#allocation5], 128, 128, 8
    $region5: #{tpu_custom_call.1} parent=1 // pred_fallthru
      _
    // Predicated region
    $region6: #{tpu_custom_call.1} parent=1 // pred_check
      _
    $region7: #{tpu_custom_call.1} parent=1 // pred_check_branch
      %23 = sbr.rel (0) target = $region9
    $region8: #{tpu_custom_call.1} parent=1 // pred_region
      %24 = dma.done [#allocation5], 256
    $region9: #{tpu_custom_call.1} parent=1 // pred_fallthru
      _
    %v25 = vld [vmem:[#allocation4] sm:$0xff]
    %v26 = vld [vmem:[#allocation4 + $0x8] sm:$0xff]
    %s27 = sld [smem:[#allocation3]]
    %s28 = sand.u32 %s27, 15
    %s29 = sand.u32 %s28, 7
    %s30 = sshrl.u32 %s28, 3
    %s31 = ssub.s32 8, %s29
    %v32 = vstv %s31
    %v33 = vrot.slane %v25, %v32
    %v34 = vstv %s31
    %v35 = vrot.slane %v26, %v34
    %v36 = vstv %s29
    %v37 = vlaneseq
    %v38 = vshrl.u32 %v37, 7
    %vm39 = vcmp.lt.s32.totalorder %v38, %v36
    %v40 = vsel %vm39, %v33, %v35
    %v41 = vsel %vm39, %v35, %v33
    %s42 = sand.u32 %s30, 1
    %v43 = vstv %s42
    %vm44 = vcmp.ne.s32.totalorder %v43, 0
    %v45 = vsel %vm44, %v40, %v41
    %v46 = vsel %vm44, %v41, %v40
    %47 = vst [vmem:[#allocation7] sm:$0xff] %v45
    %48 = vst [vmem:[#allocation7 + $0x8] sm:$0xff] %v46
    // Predicated region
    $region10: #{tpu_custom_call.1} parent=1 // pred_check
      _
    $region11: #{tpu_custom_call.1} parent=1 // pred_check_branch
      %50 = sbr.rel (0) target = $region13
    $region12: #{tpu_custom_call.1} parent=1 // pred_region
      %s52 = ssub.s32 256, 256
      %53 = vsyncadd [#allocation6], %s52
      %s54 = sshll.u32 [#allocation7], 4
      %s55 = int_to_ptr.vmem [resolvable:$true] %s54
      %60 = dma.vmem_to_hbm [thread:$0]  %s55, 256, %s2, [#allocation6], 128, 128, 8
    $region13: #{tpu_custom_call.1} parent=1 // pred_fallthru
      _
    // Predicated region
    $region14: #{tpu_custom_call.1} parent=1 // pred_check
      _
    $region15: #{tpu_custom_call.1} parent=1 // pred_check_branch
      %62 = sbr.rel (0) target = $region17
    $region16: #{tpu_custom_call.1} parent=1 // pred_region
      %63 = dma.done [#allocation6], 256
    $region17: #{tpu_custom_call.1} parent=1 // pred_fallthru
      _
    %64 = vsyncpa [#allocation5], 1
    %65 = vsyncpa [#allocation6], 1

</llo_original>
